<compile_context>
chip_gen: v6e
topology: v6e:2x2x1
jax: 0.10.0
libtpu: 0.0.40
codegen_flags: <defaults>
</compile_context>

<pallas_src>
import functools

import numpy as np
import jax
import jax.numpy as jnp
from jax.experimental import pallas as pl
from jax.experimental.pallas import tpu as pltpu

_LOG_2PI = float(np.log(2.0 * np.pi))


def _round_up(x, m):
    return ((x + m - 1) // m) * m


def _fused_kernel(wv_ref, a_ref, bc_ref, scal_ref, x_ref, out_ref, lp_ref,
                  *, vocab, v_tile):
    """One vocab tile of log-probs into VMEM scratch; softmax + final matmul at the end.

    wv_ref   : (Vt, E)   word-vector tile (untransposed; vocab on sublanes here,
                         but the matmul output puts vocab on the 128-lane axis)
    a_ref    : (K, E)    1 / d_k
    bc_ref   : (2K, E)   rows [0:K] = mu_k / d_k, rows [K:2K] = w_k / d_k
    scal_ref : (K, 2)    [sum(mu*w/d), 1/(1 + sum(w^2/d))]
    x_ref    : (B, K)    sampled topic proportions
    out_ref  : (B, Vpad) output (written only at the last grid step)
    lp_ref   : (K, Vpad) VMEM scratch holding the (shifted) log-probs
    """
    i = pl.program_id(0)

    wv = wv_ref[...]                        # (Vt, E)  f32
    wv2 = wv * wv                           # in-kernel square (VPU, stream already loaded)

    a = a_ref[...]                          # (K, E)
    bc = bc_ref[...]                        # (2K, E)
    const_b = scal_ref[:, 0:1]              # (K, 1)   sum(mu*w/d)
    inv_cap = scal_ref[:, 1:2]              # (K, 1)   1 / (1 + w^T D^-1 w)

    # Contract the trailing E axis of both operands (A @ B^T on the MXU).
    dn = (((1,), (1,)), ((), ()))
    lin = jax.lax.dot_general(bc, wv, dn, preferred_element_type=jnp.float32)   # (2K, Vt)
    quad = jax.lax.dot_general(a, wv2, dn, preferred_element_type=jnp.float32)  # (K, Vt)

    k = a.shape[0]
    xb = lin[:k]                            # x . (mu/d)
    xc = lin[k:]                            # x . (w/d)
    proj = xc - const_b                     # (x - mu)^T D^-1 w
    # Per-topic constants dropped (cancel in softmax): lp' = -0.5 * maha' (shifted).
    lp_tile = -0.5 * (quad - 2.0 * xb - proj * proj * inv_cap)   # (K, Vt)

    # Mask lanes past the true vocab (partial last tile) so they vanish in the softmax.
    col = i * v_tile + jax.lax.broadcasted_iota(jnp.int32, lp_tile.shape, 1)
    lp_tile = jnp.where(col < vocab, lp_tile, -1e30)

    start = pl.multiple_of(i * v_tile, v_tile)
    lp_ref[:, pl.ds(start, v_tile)] = lp_tile

    @pl.when(i == pl.num_programs(0) - 1)
    def _():
        lp = lp_ref[...]                                   # (K, Vpad)
        m = jnp.max(lp, axis=-1, keepdims=True)
        p = jnp.exp(lp - m)
        z = jnp.sum(p, axis=-1, keepdims=True)
        dist = p * (1.0 / z)                               # row softmax over vocab
        out_ref[...] = jnp.dot(x_ref[...], dist, preferred_element_type=jnp.float32)


@functools.partial(jax.jit, static_argnames=("v_tile",))
def gaussian_generator_forward(sampled_x, word_vectors, mu, cov_factor, cov_diag,
                               *, v_tile=512):
    vocab, e_dim = word_vectors.shape
    k_topics = mu.shape[0]
    batch = sampled_x.shape[0]
    assert cov_factor.shape == (k_topics, e_dim, 1), "GaussianGenerator assumes rank-1 cov_factor"

    # ---- tiny per-topic precompute (glue, O(K*E)) ----
    w = cov_factor[..., 0]                              # (K, E)
    d = jnp.maximum(cov_diag, 1e-6)                     # clamp_cov_diag()
    a = 1.0 / d                                         # (K, E)
    b = mu / d                                          # (K, E)
    c = w / d                                           # (K, E)
    bc = jnp.concatenate([b, c], axis=0)                # (2K, E) stacked MXU LHS
    cap = 1.0 + jnp.sum(w * c, axis=-1)                 # (K,)   1 + w^T D^-1 w
    const_b = jnp.sum(mu * c, axis=-1)                  # (K,)   mu^T D^-1 w
    scal = jnp.stack([const_b, 1.0 / cap], axis=-1)     # (K, 2)
    # logdet / sum(mu^2/d) / E*log(2*pi) cancel in the per-topic softmax -> omitted.

    # ---- lane-aligned vocab tiling ----
    vt = min(_round_up(v_tile, 128), _round_up(vocab, 128))
    n_tiles = pl.cdiv(vocab, vt)
    v_pad = n_tiles * vt

    out = pl.pallas_call(
        functools.partial(_fused_kernel, vocab=vocab, v_tile=vt),
        out_shape=jax.ShapeDtypeStruct((batch, v_pad), jnp.float32),
        grid=(n_tiles,),
        in_specs=[
            pl.BlockSpec((vt, e_dim), lambda i: (i, 0)),          # word_vectors (untransposed)
            pl.BlockSpec((k_topics, e_dim), lambda i: (0, 0)),    # 1/d
            pl.BlockSpec((2 * k_topics, e_dim), lambda i: (0, 0)),# [mu/d ; w/d]
            pl.BlockSpec((k_topics, 2), lambda i: (0, 0)),        # per-topic scalars
            pl.BlockSpec((batch, k_topics), lambda i: (0, 0)),    # sampled_x
        ],
        out_specs=pl.BlockSpec((batch, v_pad), lambda i: (0, 0)),
        scratch_shapes=[pltpu.VMEM((k_topics, v_pad), jnp.float32)],
        compiler_params=pltpu.CompilerParams(dimension_semantics=("arbitrary",)),
    )(word_vectors, a, bc, scal, sampled_x)

    if v_pad != vocab:
        out = out[:, :vocab]
    return out


def reference_forward(sampled_x, word_vectors, mu, cov_factor, cov_diag):
    """Plain-JAX reference mirroring torch LowRankMultivariateNormal.log_prob + softmax + mm."""
    d = jnp.maximum(cov_diag, 1e-6)
    w = cov_factor[..., 0]
    diff = word_vectors[:, None, :] - mu[None, :, :]          # (V, K, E)
    dinv_diff = diff / d[None, :, :]
    quad = jnp.sum(diff * dinv_diff, axis=-1)                 # (V, K)
    proj = jnp.sum(dinv_diff * w[None, :, :], axis=-1)        # (V, K)
    cap = 1.0 + jnp.sum(w * w / d, axis=-1)                   # (K,)
    maha = quad - proj * proj / cap[None, :]
    logdet = jnp.sum(jnp.log(d), axis=-1) + jnp.log(cap)      # (K,)
    e_dim = word_vectors.shape[1]
    lp = -0.5 * (e_dim * _LOG_2PI + logdet[None, :] + maha)   # (V, K)
    dist = jax.nn.softmax(lp.T, axis=-1)                      # (K, V)
    return sampled_x @ dist


if __name__ == "__main__":
    # Small shapes consistent with the module: vocab=256, embedding=128, topics=8, batch=8.
    vocab, e_dim, k_topics, batch = 256, 128, 8, 8
    key = jax.random.PRNGKey(0)
    k1, k2, k3, k4, k5 = jax.random.split(key, 5)

    word_vectors = jax.random.normal(k1, (vocab, e_dim), dtype=jnp.float32)
    mu = jax.random.normal(k2, (k_topics, e_dim), dtype=jnp.float32)
    cov_factor = jax.random.normal(k3, (k_topics, e_dim, 1), dtype=jnp.float32)
    cov_diag = jax.random.uniform(k4, (k_topics, e_dim), dtype=jnp.float32) * 50.0
    # sampled_x is a topic-proportion sample fed to the generator: (batch, num_topics)
    sampled_x = jax.nn.softmax(jax.random.normal(k5, (batch, k_topics), dtype=jnp.float32), axis=-1)

    out = gaussian_generator_forward(sampled_x, word_vectors, mu, cov_factor, cov_diag)
    out = jax.block_until_ready(out)

    ref = reference_forward(sampled_x, word_vectors, mu, cov_factor, cov_diag)
    assert out.shape == (batch, vocab)
    assert np.allclose(np.asarray(out), np.asarray(ref), rtol=1e-2, atol=1e-4), "mismatch vs reference"

    print("KERNEL_OK")
</pallas_src>

<mosaic_0001>
module attributes {stable_mosaic.version = 11 : i64} {
  func.func @_fused_kernel(%arg0: i32, %arg1: memref<256x128xf32, #tpu.memory_space<vmem>>, %arg2: memref<8x128xf32, #tpu.memory_space<vmem>>, %arg3: memref<16x128xf32, #tpu.memory_space<vmem>>, %arg4: memref<8x2xf32, #tpu.memory_space<vmem>>, %arg5: memref<8x8xf32, #tpu.memory_space<vmem>>, %arg6: memref<8x256xf32, #tpu.memory_space<vmem>>, %arg7: memref<8x256xf32, #tpu.memory_space<vmem>>) attributes {dimension_semantics = [#tpu.dimension_semantics<arbitrary>], iteration_bounds = array<i64: 1>, scalar_prefetch = 0 : i64, scratch_operands = 1 : i64, tpu.core_type = #tpu.core_type<tc>, window_params = [{transform_indices = @transform_0, window_bounds = array<i64: 256, 128>}, {pipeline_mode = #tpu.pipeline_mode<synchronous>, transform_indices = @transform_1, window_bounds = array<i64: 8, 128>}, {pipeline_mode = #tpu.pipeline_mode<synchronous>, transform_indices = @transform_2, window_bounds = array<i64: 16, 128>}, {pipeline_mode = #tpu.pipeline_mode<synchronous>, transform_indices = @transform_3, window_bounds = array<i64: 8, 2>}, {pipeline_mode = #tpu.pipeline_mode<synchronous>, transform_indices = @transform_4, window_bounds = array<i64: 8, 8>}, {pipeline_mode = #tpu.pipeline_mode<synchronous>, transform_indices = @transform_5, window_bounds = array<i64: 8, 256>}]} {
    %c0 = arith.constant 0 : index
    %c0_0 = arith.constant 0 : index
    %0 = vector.load %arg1[%c0, %c0_0] : memref<256x128xf32, #tpu.memory_space<vmem>>, vector<256x128xf32>
    %1 = arith.mulf %0, %0 : vector<256x128xf32>
    %c0_1 = arith.constant 0 : index
    %c0_2 = arith.constant 0 : index
    %2 = vector.load %arg2[%c0_1, %c0_2] : memref<8x128xf32, #tpu.memory_space<vmem>>, vector<8x128xf32>
    %c0_3 = arith.constant 0 : index
    %c0_4 = arith.constant 0 : index
    %3 = vector.load %arg3[%c0_3, %c0_4] : memref<16x128xf32, #tpu.memory_space<vmem>>, vector<16x128xf32>
    %c0_5 = arith.constant 0 : index
    %c0_6 = arith.constant 0 : index
    %4 = vector.load %arg4[%c0_5, %c0_6] : memref<8x2xf32, #tpu.memory_space<vmem>>, vector<8x1xf32>
    %c0_7 = arith.constant 0 : index
    %c1 = arith.constant 1 : index
    %5 = vector.load %arg4[%c0_7, %c1] : memref<8x2xf32, #tpu.memory_space<vmem>>, vector<8x1xf32>
    %cst = arith.constant dense<0.000000e+00> : vector<16x256xf32>
    %6 = tpu.matmul %3, %0, %cst {dimension_numbers = #tpu.dot_dimension_numbers<[1], [1], [0], [0], [0, 0, 1, 0], [], []>} : vector<16x128xf32>, vector<256x128xf32>, vector<16x256xf32> -> vector<16x256xf32>
    %cst_8 = arith.constant dense<0.000000e+00> : vector<8x256xf32>
    %7 = tpu.matmul %2, %1, %cst_8 {dimension_numbers = #tpu.dot_dimension_numbers<[1], [1], [0], [0], [0, 0, 1, 0], [], []>} : vector<8x128xf32>, vector<256x128xf32>, vector<8x256xf32> -> vector<8x256xf32>
    %8 = vector.extract_strided_slice %6 {offsets = [0, 0], sizes = [8, 256], strides = [1, 1]} : vector<16x256xf32> to vector<8x256xf32>
    %9 = vector.extract_strided_slice %6 {offsets = [8, 0], sizes = [8, 256], strides = [1, 1]} : vector<16x256xf32> to vector<8x256xf32>
    %10 = vector.broadcast %4 : vector<8x1xf32> to vector<8x256xf32>
    %11 = arith.subf %9, %10 : vector<8x256xf32>
    %cst_9 = arith.constant 2.000000e+00 : f32
    %12 = vector.broadcast %cst_9 : f32 to vector<8x256xf32>
    %13 = arith.mulf %12, %8 : vector<8x256xf32>
    %14 = arith.subf %7, %13 : vector<8x256xf32>
    %15 = arith.mulf %11, %11 : vector<8x256xf32>
    %16 = vector.broadcast %5 : vector<8x1xf32> to vector<8x256xf32>
    %17 = arith.mulf %15, %16 : vector<8x256xf32>
    %18 = arith.subf %14, %17 : vector<8x256xf32>
    %cst_10 = arith.constant -5.000000e-01 : f32
    %19 = vector.broadcast %cst_10 : f32 to vector<8x256xf32>
    %20 = arith.mulf %19, %18 : vector<8x256xf32>
    %c256_i32 = arith.constant 256 : i32
    %21 = arith.muli %arg0, %c256_i32 : i32
    %22 = tpu.iota {dimensions = array<i32: 1>} : vector<8x256xi32>
    %23 = vector.broadcast %21 : i32 to vector<8x256xi32>
    %24 = arith.addi %23, %22 : vector<8x256xi32>
    %c256_i32_11 = arith.constant 256 : i32
    %25 = vector.broadcast %c256_i32_11 : i32 to vector<8x256xi32>
    %26 = arith.cmpi slt, %24, %25 : vector<8x256xi32>
    %cst_12 = arith.constant -1.000000e+30 : f32
    %27 = vector.broadcast %cst_12 : f32 to vector<8x256xf32>
    %28 = arith.select %26, %20, %27 : vector<8x256xi1>, vector<8x256xf32>
    %c256_i32_13 = arith.constant 256 : i32
    %29 = arith.muli %arg0, %c256_i32_13 : i32
    %30 = tpu.assume_multiple %29, 256 : i32
    %c0_14 = arith.constant 0 : index
    %31 = arith.index_cast %30 : i32 to index
    %32 = vector.load %arg7[%c0_14, %31] : memref<8x256xf32, #tpu.memory_space<vmem>>, vector<8x256xf32>
    tpu.vector_store %arg7[%c0_14, %31], %28 {strides = array<i32>} : memref<8x256xf32, #tpu.memory_space<vmem>>, vector<8x256xf32>,
    %c0_i32 = arith.constant 0 : i32
    %33 = arith.cmpi eq, %arg0, %c0_i32 : i32
    %34 = arith.extui %33 : i1 to i32
    %c0_i32_15 = arith.constant 0 : i32
    %35 = arith.cmpi ne, %34, %c0_i32_15 : i32
    scf.if %35 {
      %c0_16 = arith.constant 0 : index
      %c0_17 = arith.constant 0 : index
      %36 = vector.load %arg7[%c0_16, %c0_17] : memref<8x256xf32, #tpu.memory_space<vmem>>, vector<8x256xf32>
      %cst_18 = arith.constant dense<0xFF800000> : vector<8xf32>
      %37 = vector.multi_reduction <maximumf>, %36, %cst_18 [1] : vector<8x256xf32> to vector<8xf32>
      %38 = vector.shape_cast %37 : vector<8xf32> to vector<8x1xf32>
      %39 = vector.broadcast %38 : vector<8x1xf32> to vector<8x256xf32>
      %40 = arith.subf %36, %39 : vector<8x256xf32>
      %41 = math.exp %40 : vector<8x256xf32>
      %cst_19 = arith.constant dense<0.000000e+00> : vector<8xf32>
      %42 = vector.multi_reduction <add>, %41, %cst_19 [1] : vector<8x256xf32> to vector<8xf32>
      %43 = vector.shape_cast %42 : vector<8xf32> to vector<8x1xf32>
      %cst_20 = arith.constant 1.000000e+00 : f32
      %44 = vector.broadcast %cst_20 : f32 to vector<8x1xf32>
      %45 = arith.divf %44, %43 : vector<8x1xf32>
      %46 = vector.broadcast %45 : vector<8x1xf32> to vector<8x256xf32>
      %47 = arith.mulf %41, %46 : vector<8x256xf32>
      %c0_21 = arith.constant 0 : index
      %c0_22 = arith.constant 0 : index
      %48 = vector.load %arg5[%c0_21, %c0_22] : memref<8x8xf32, #tpu.memory_space<vmem>>, vector<8x8xf32>
      %cst_23 = arith.constant dense<0.000000e+00> : vector<8x256xf32>
      %49 = tpu.matmul %48, %47, %cst_23 {dimension_numbers = #tpu.dot_dimension_numbers<[1], [0], [0], [1], [0, 0, 1, 1], [], []>} : vector<8x8xf32>, vector<8x256xf32>, vector<8x256xf32> -> vector<8x256xf32>
      %c0_24 = arith.constant 0 : index
      %c0_25 = arith.constant 0 : index
      %50 = vector.load %arg6[%c0_24, %c0_25] : memref<8x256xf32, #tpu.memory_space<vmem>>, vector<8x256xf32>
      tpu.vector_store %arg6[%c0_24, %c0_25], %49 {strides = array<i32>} : memref<8x256xf32, #tpu.memory_space<vmem>>, vector<8x256xf32>,
    } else {
    }
    return
  }
  func.func @transform_0(%arg0: i32) -> (i32, i32) {
    %c0_i32 = arith.constant 0 : i32
    %c0_i32_0 = arith.constant 0 : i32
    return %arg0, %c0_i32 : i32, i32
  }
  func.func @transform_1(%arg0: i32) -> (i32, i32) {
    %c0_i32 = arith.constant 0 : i32
    %c0_i32_0 = arith.constant 0 : i32
    %c0_i32_1 = arith.constant 0 : i32
    return %c0_i32, %c0_i32_0 : i32, i32
  }
  func.func @transform_2(%arg0: i32) -> (i32, i32) {
    %c0_i32 = arith.constant 0 : i32
    %c0_i32_0 = arith.constant 0 : i32
    %c0_i32_1 = arith.constant 0 : i32
    return %c0_i32, %c0_i32_0 : i32, i32
  }
  func.func @transform_3(%arg0: i32) -> (i32, i32) {
    %c0_i32 = arith.constant 0 : i32
    %c0_i32_0 = arith.constant 0 : i32
    %c0_i32_1 = arith.constant 0 : i32
    return %c0_i32, %c0_i32_0 : i32, i32
  }
  func.func @transform_4(%arg0: i32) -> (i32, i32) {
    %c0_i32 = arith.constant 0 : i32
    %c0_i32_0 = arith.constant 0 : i32
    %c0_i32_1 = arith.constant 0 : i32
    return %c0_i32, %c0_i32_0 : i32, i32
  }
  func.func @transform_5(%arg0: i32) -> (i32, i32) {
    %c0_i32 = arith.constant 0 : i32
    %c0_i32_0 = arith.constant 0 : i32
    %c0_i32_1 = arith.constant 0 : i32
    return %c0_i32, %c0_i32_0 : i32, i32
  }
}

</mosaic_0001>

<llo_original>
// kernel: gaussian_generator_forward.1
$region0: #{gaussian_generator_forward.1}
  #allocation0 [shape = 'u32[]', space=smem, size = 0x4, offset = 0x4, fixed_abs, tag = 'smem constant byte address 0x4 - core index']
  #allocation1 [shape = 'u32[144,128]{1,0:T(1,128)}', space=vmem, size = 0x12000, scoped, tag = 'internal scratch']
  #allocation2 [shape = 'f32[8,256]{1,0:T(8,128)}', space=vmem, size = 0x2000, scoped, tag = 'scratch operand']
  %s0 = inlined_call_operand.hbm [shape: f32[256,128], index: 0, kind: input, shape index: {}]
  %s1 = inlined_call_operand.vmem [shape: f32[8,128], index: 1, kind: input, shape index: {}]
  %s2 = inlined_call_operand.vmem [shape: f32[16,128], index: 2, kind: input, shape index: {}]
  %s3 = inlined_call_operand.vmem [shape: f32[8,2], index: 3, kind: input, shape index: {}]
  %s4 = inlined_call_operand.vmem [shape: f32[8,8], index: 4, kind: input, shape index: {}]
  %s5 = inlined_call_operand.hbm [shape: f32[8,256], index: 5, kind: output, shape index: {}]
  %s6 = sld [smem:[#allocation0]]
  $region38: #{gaussian_generator_forward.1} parent=0
    _
  %s8 = ssub.s32 1, %s6
  %s9 = scalar_select 0, %s8, %s6
  $region1: #{gaussian_generator_forward.1} parent=0
    #allocation3 [shape = 'u8[131072]{0}', space=vmem, size = 0x20000, scoped, tag = 'input window, operand 0, single buffered']
    #allocation4 [shape = 's32[1]{0}', space=sflag, size = 0x4, scoped, tag = 'scoped memory for gaussian_generator_forward.1']
    #allocation5 [shape = 's32[1]{0}', space=sflag, size = 0x4, scoped, tag = 'scoped memory for gaussian_generator_forward.1']
    #allocation6 [shape = 'u8[8192]{0}', space=vmem, size = 0x2000, scoped, tag = 'output window, operand 0, single buffered']
    %10 = vsyncpa [#allocation4], 0
    %11 = vsyncpa [#allocation5], 0
    // Predicated region
    $region2: #{gaussian_generator_forward.1} parent=1 // pred_check
      _
    $region3: #{gaussian_generator_forward.1} parent=1 // pred_check_branch
      %13 = sbr.rel (0) target = $region5
    $region4: #{gaussian_generator_forward.1} parent=1 // pred_region
      %s15 = ssub.s32 4096, 4096
      %16 = vsyncadd [#allocation4], %s15
      %s17 = sshll.u32 [#allocation3], 4
      %s18 = int_to_ptr.vmem [resolvable:$true] %s17
      %23 = dma.hbm_to_vmem [thread:$0]  %s0, 4096, %s18, [#allocation4], 128, 128, 8
    $region5: #{gaussian_generator_forward.1} parent=1 // pred_fallthru
      _
    // Predicated region
    $region6: #{gaussian_generator_forward.1} parent=1 // pred_check
      _
    $region7: #{gaussian_generator_forward.1} parent=1 // pred_check_branch
      %25 = sbr.rel (0) target = $region9
    $region8: #{gaussian_generator_forward.1} parent=1 // pred_region
      _
    $region9: #{gaussian_generator_forward.1} parent=1 // pred_fallthru
      _
    // Predicated region
    $region10: #{gaussian_generator_forward.1} parent=1 // pred_check
      _
    $region11: #{gaussian_generator_forward.1} parent=1 // pred_check_branch
      %27 = sbr.rel (0) target = $region13
    $region12: #{gaussian_generator_forward.1} parent=1 // pred_region
      _
    $region13: #{gaussian_generator_forward.1} parent=1 // pred_fallthru
      _
    // Predicated region
    $region14: #{gaussian_generator_forward.1} parent=1 // pred_check
      _
    $region15: #{gaussian_generator_forward.1} parent=1 // pred_check_branch
      %29 = sbr.rel (0) target = $region17
    $region16: #{gaussian_generator_forward.1} parent=1 // pred_region
      _
    $region17: #{gaussian_generator_forward.1} parent=1 // pred_fallthru
      _
    // Predicated region
    $region18: #{gaussian_generator_forward.1} parent=1 // pred_check
      _
    $region19: #{gaussian_generator_forward.1} parent=1 // pred_check_branch
      %31 = sbr.rel (0) target = $region21
    $region20: #{gaussian_generator_forward.1} parent=1 // pred_region
      _
    $region21: #{gaussian_generator_forward.1} parent=1 // pred_fallthru
      _
    // Predicated region
    $region22: #{gaussian_generator_forward.1} parent=1 // pred_check
      _
    $region23: #{gaussian_generator_forward.1} parent=1 // pred_check_branch
      %33 = sbr.rel (0) target = $region25
    $region24: #{gaussian_generator_forward.1} parent=1 // pred_region
      %34 = dma.done [#allocation4], 4096
    $region25: #{gaussian_generator_forward.1} parent=1 // pred_fallthru
      _
    %v35 = vld [vmem:[#allocation3] sm:$0xff]
    %v36 = vld [vmem:[#allocation3 + $0x8] sm:$0xff]
    %v37 = vld [vmem:[#allocation3 + $0x10] sm:$0xff]
    %v38 = vld [vmem:[#allocation3 + $0x18] sm:$0xff]
    %v39 = vld [vmem:[#allocation3 + $0x20] sm:$0xff]
    %v40 = vld [vmem:[#allocation3 + $0x28] sm:$0xff]
    %v41 = vld [vmem:[#allocation3 + $0x30] sm:$0xff]
    %v42 = vld [vmem:[#allocation3 + $0x38] sm:$0xff]
    %v43 = vld [vmem:[#allocation3 + $0x40] sm:$0xff]
    %v44 = vld [vmem:[#allocation3 + $0x48] sm:$0xff]
    %v45 = vld [vmem:[#allocation3 + $0x50] sm:$0xff]
    %v46 = vld [vmem:[#allocation3 + $0x58] sm:$0xff]
    %v47 = vld [vmem:[#allocation3 + $0x60] sm:$0xff]
    %v48 = vld [vmem:[#allocation3 + $0x68] sm:$0xff]
    %v49 = vld [vmem:[#allocation3 + $0x70] sm:$0xff]
    %v50 = vld [vmem:[#allocation3 + $0x78] sm:$0xff]
    %v51 = vld [vmem:[#allocation3 + $0x80] sm:$0xff]
    %v52 = vld [vmem:[#allocation3 + $0x88] sm:$0xff]
    %v53 = vld [vmem:[#allocation3 + $0x90] sm:$0xff]
    %v54 = vld [vmem:[#allocation3 + $0x98] sm:$0xff]
    %v55 = vld [vmem:[#allocation3 + $0xa0] sm:$0xff]
    %v56 = vld [vmem:[#allocation3 + $0xa8] sm:$0xff]
    %v57 = vld [vmem:[#allocation3 + $0xb0] sm:$0xff]
    %v58 = vld [vmem:[#allocation3 + $0xb8] sm:$0xff]
    %v59 = vld [vmem:[#allocation3 + $0xc0] sm:$0xff]
    %v60 = vld [vmem:[#allocation3 + $0xc8] sm:$0xff]
    %v61 = vld [vmem:[#allocation3 + $0xd0] sm:$0xff]
    %v62 = vld [vmem:[#allocation3 + $0xd8] sm:$0xff]
    %v63 = vld [vmem:[#allocation3 + $0xe0] sm:$0xff]
    %v64 = vld [vmem:[#allocation3 + $0xe8] sm:$0xff]
    %v65 = vld [vmem:[#allocation3 + $0xf0] sm:$0xff]
    %v66 = vld [vmem:[#allocation3 + $0xf8] sm:$0xff]
    %v67 = vmul.f32 %v35, %v35
    %v68 = vmul.f32 %v36, %v36
    %v69 = vmul.f32 %v37, %v37
    %v70 = vmul.f32 %v38, %v38
    %v71 = vmul.f32 %v39, %v39
    %v72 = vmul.f32 %v40, %v40
    %v73 = vmul.f32 %v41, %v41
    %v74 = vmul.f32 %v42, %v42
    %v75 = vmul.f32 %v43, %v43
    %v76 = vmul.f32 %v44, %v44
    %v77 = vmul.f32 %v45, %v45
    %v78 = vmul.f32 %v46, %v46
    %v79 = vmul.f32 %v47, %v47
    %v80 = vmul.f32 %v48, %v48
    %v81 = vmul.f32 %v49, %v49
    %v82 = vmul.f32 %v50, %v50
    %v83 = vmul.f32 %v51, %v51
    %v84 = vmul.f32 %v52, %v52
    %v85 = vmul.f32 %v53, %v53
    %v86 = vmul.f32 %v54, %v54
    %v87 = vmul.f32 %v55, %v55
    %v88 = vmul.f32 %v56, %v56
    %v89 = vmul.f32 %v57, %v57
    %v90 = vmul.f32 %v58, %v58
    %v91 = vmul.f32 %v59, %v59
    %v92 = vmul.f32 %v60, %v60
    %v93 = vmul.f32 %v61, %v61
    %v94 = vmul.f32 %v62, %v62
    %v95 = vmul.f32 %v63, %v63
    %v96 = vmul.f32 %v64, %v64
    %v97 = vmul.f32 %v65, %v65
    %v98 = vmul.f32 %v66, %v66
    %v99 = vld [vmem:[%s1] sm:$0xff]
    %v100 = vld [vmem:[%s2] sm:$0xff]
    %v101 = vld [vmem:[%s2 + $0x8] sm:$0xff]
    %v102 = vld [vmem:[%s3] sm:$0xff]
    %103 = vmatprep.subr.mxu0 0.0
    %104 = vmatpush1.xpose.msra.mxu0 %v50
    %105 = vmatprep.subr.mxu0 0.0
    %106 = vmatpush1.xpose.msra.mxu0 %v49
    %107 = vmatprep.subr.mxu0 0.0
    %108 = vmatpush1.xpose.msra.mxu0 %v48
    %109 = vmatprep.subr.mxu0 0.0
    %110 = vmatpush1.xpose.msra.mxu0 %v47
    %111 = vmatprep.subr.mxu0 0.0
    %112 = vmatpush1.xpose.msra.mxu0 %v46
    %113 = vmatprep.subr.mxu0 0.0
    %114 = vmatpush1.xpose.msra.mxu0 %v45
    %115 = vmatprep.subr.mxu0 0.0
    %116 = vmatpush1.xpose.msra.mxu0 %v44
    %117 = vmatprep.subr.mxu0 0.0
    %118 = vmatpush1.xpose.msra.mxu0 %v43
    %119 = vmatprep.subr.mxu0 0.0
    %120 = vmatpush1.xpose.msra.mxu0 %v42
    %121 = vmatprep.subr.mxu0 0.0
    %122 = vmatpush1.xpose.msra.mxu0 %v41
    %123 = vmatprep.subr.mxu0 0.0
    %124 = vmatpush1.xpose.msra.mxu0 %v40
    %125 = vmatprep.subr.mxu0 0.0
    %126 = vmatpush1.xpose.msra.mxu0 %v39
    %127 = vmatprep.subr.mxu0 0.0
    %128 = vmatpush1.xpose.msra.mxu0 %v38
    %129 = vmatprep.subr.mxu0 0.0
    %130 = vmatpush1.xpose.msra.mxu0 %v37
    %131 = vmatprep.subr.mxu0 0.0
    %132 = vmatpush1.xpose.msra.mxu0 %v36
    %133 = vmatprep.subr.mxu0 0.0
    %134 = vmatpush1.xpose.msra.mxu0 %v35
    %135 = vmatprep.subr.mxu0 0.0
    %136 = vmatpush2.xpose.msra.mxu0 %v66
    %137 = vmatprep.subr.mxu0 0.0
    %138 = vmatpush2.xpose.msra.mxu0 %v65
    %139 = vmatprep.subr.mxu0 0.0
    %140 = vmatpush2.xpose.msra.mxu0 %v64
    %141 = vmatprep.subr.mxu0 0.0
    %142 = vmatpush2.xpose.msra.mxu0 %v63
    %143 = vmatprep.subr.mxu0 0.0
    %144 = vmatpush2.xpose.msra.mxu0 %v62
    %145 = vmatprep.subr.mxu0 0.0
    %146 = vmatpush2.xpose.msra.mxu0 %v61
    %147 = vmatprep.subr.mxu0 0.0
    %148 = vmatpush2.xpose.msra.mxu0 %v60
    %149 = vmatprep.subr.mxu0 0.0
    %150 = vmatpush2.xpose.msra.mxu0 %v59
    %151 = vmatprep.subr.mxu0 0.0
    %152 = vmatpush2.xpose.msra.mxu0 %v58
    %153 = vmatprep.subr.mxu0 0.0
    %154 = vmatpush2.xpose.msra.mxu0 %v57
    %155 = vmatprep.subr.mxu0 0.0
    %156 = vmatpush2.xpose.msra.mxu0 %v56
    %157 = vmatprep.subr.mxu0 0.0
    %158 = vmatpush2.xpose.msra.mxu0 %v55
    %159 = vmatprep.subr.mxu0 0.0
    %160 = vmatpush2.xpose.msra.mxu0 %v54
    %161 = vmatprep.subr.mxu0 0.0
    %162 = vmatpush2.xpose.msra.mxu0 %v53
    %163 = vmatprep.subr.mxu0 0.0
    %164 = vmatpush2.xpose.msra.mxu0 %v52
    %165 = vmatprep.subr.mxu0 0.0
    %166 = vmatpush2.xpose.msra.mxu0 %v51
    %167 = vmatprep.mubr.f32.mxu0 0.0
    %168 = vmatmul.mubr.f32.gmra.mxu0 %v100
    %v169 = vpop.f32.mrf.mxu0
    %v170 = vadd.f32 0.0, %v169
    %v171 = vpop.f32.mrf.mxu0
    %v172 = vadd.f32 0.0, %v171
    %173 = vmatprep.mubr.f32.mxu0 0.0
    %174 = vmatmul.mubr.f32.gmra.mxu0 %v101
    %v175 = vpop.f32.mrf.mxu0
    %v176 = vadd.f32 0.0, %v175
    %v177 = vpop.f32.mrf.mxu0
    %v178 = vadd.f32 0.0, %v177
    %179 = vdwg.mxu0
    %180 = vmatprep.subr.mxu0 0.0
    %181 = vmatpush1.xpose.msra.mxu0 %v82
    %182 = vmatprep.subr.mxu0 0.0
    %183 = vmatpush1.xpose.msra.mxu0 %v81
    %184 = vmatprep.subr.mxu0 0.0
    %185 = vmatpush1.xpose.msra.mxu0 %v80
    %186 = vmatprep.subr.mxu0 0.0
    %187 = vmatpush1.xpose.msra.mxu0 %v79
    %188 = vmatprep.subr.mxu0 0.0
    %189 = vmatpush1.xpose.msra.mxu0 %v78
    %190 = vmatprep.subr.mxu0 0.0
    %191 = vmatpush1.xpose.msra.mxu0 %v77
    %192 = vmatprep.subr.mxu0 0.0
    %193 = vmatpush1.xpose.msra.mxu0 %v76
    %194 = vmatprep.subr.mxu0 0.0
    %195 = vmatpush1.xpose.msra.mxu0 %v75
    %196 = vmatprep.subr.mxu0 0.0
    %197 = vmatpush1.xpose.msra.mxu0 %v74
    %198 = vmatprep.subr.mxu0 0.0
    %199 = vmatpush1.xpose.msra.mxu0 %v73
    %200 = vmatprep.subr.mxu0 0.0
    %201 = vmatpush1.xpose.msra.mxu0 %v72
    %202 = vmatprep.subr.mxu0 0.0
    %203 = vmatpush1.xpose.msra.mxu0 %v71
    %204 = vmatprep.subr.mxu0 0.0
    %205 = vmatpush1.xpose.msra.mxu0 %v70
    %206 = vmatprep.subr.mxu0 0.0
    %207 = vmatpush1.xpose.msra.mxu0 %v69
    %208 = vmatprep.subr.mxu0 0.0
    %209 = vmatpush1.xpose.msra.mxu0 %v68
    %210 = vmatprep.subr.mxu0 0.0
    %211 = vmatpush1.xpose.msra.mxu0 %v67
    %212 = vmatprep.subr.mxu0 0.0
    %213 = vmatpush2.xpose.msra.mxu0 %v98
    %214 = vmatprep.subr.mxu0 0.0
    %215 = vmatpush2.xpose.msra.mxu0 %v97
    %216 = vmatprep.subr.mxu0 0.0
    %217 = vmatpush2.xpose.msra.mxu0 %v96
    %218 = vmatprep.subr.mxu0 0.0
    %219 = vmatpush2.xpose.msra.mxu0 %v95
    %220 = vmatprep.subr.mxu0 0.0
    %221 = vmatpush2.xpose.msra.mxu0 %v94
    %222 = vmatprep.subr.mxu0 0.0
    %223 = vmatpush2.xpose.msra.mxu0 %v93
    %224 = vmatprep.subr.mxu0 0.0
    %225 = vmatpush2.xpose.msra.mxu0 %v92
    %226 = vmatprep.subr.mxu0 0.0
    %227 = vmatpush2.xpose.msra.mxu0 %v91
    %228 = vmatprep.subr.mxu0 0.0
    %229 = vmatpush2.xpose.msra.mxu0 %v90
    %230 = vmatprep.subr.mxu0 0.0
    %231 = vmatpush2.xpose.msra.mxu0 %v89
    %232 = vmatprep.subr.mxu0 0.0
    %233 = vmatpush2.xpose.msra.mxu0 %v88
    %234 = vmatprep.subr.mxu0 0.0
    %235 = vmatpush2.xpose.msra.mxu0 %v87
    %236 = vmatprep.subr.mxu0 0.0
    %237 = vmatpush2.xpose.msra.mxu0 %v86
    %238 = vmatprep.subr.mxu0 0.0
    %239 = vmatpush2.xpose.msra.mxu0 %v85
    %240 = vmatprep.subr.mxu0 0.0
    %241 = vmatpush2.xpose.msra.mxu0 %v84
    %242 = vmatprep.subr.mxu0 0.0
    %243 = vmatpush2.xpose.msra.mxu0 %v83
    %244 = vmatprep.mubr.f32.mxu0 0.0
    %245 = vmatmul.mubr.f32.gmra.mxu0 %v99
    %v246 = vpop.f32.mrf.mxu0
    %v247 = vadd.f32 0.0, %v246
    %v248 = vpop.f32.mrf.mxu0
    %v249 = vadd.f32 0.0, %v248
    %250 = vdwg.mxu0
    %252 = vset.pattern.permute.xlu0 0
    %253 = vperm.xlu0 %252, %v102
    %v254 = vpop.permute.xlu0 %253
    %v256 = vsub.f32 %v176, %v254
    %v257 = vsub.f32 %v178, %v254
    %v258 = vmul.f32 %v170, 2.0
    %v259 = vmul.f32 %v172, 2.0
    %v260 = vsub.f32 %v247, %v258
    %v261 = vsub.f32 %v249, %v259
    %v262 = vmul.f32 %v256, %v256
    %v263 = vmul.f32 %v257, %v257
    %264 = vset.pattern.permute.xlu0 1
    %265 = vperm.xlu0 %264, %v102
    %v266 = vpop.permute.xlu0 %265
    %v268 = vmul.f32 %v262, %v266
    %v269 = vmul.f32 %v263, %v266
    %v270 = vsub.f32 %v260, %v268
    %v271 = vsub.f32 %v261, %v269
    %v272 = vmul.f32 %v270, -0.5
    %v273 = vmul.f32 %v271, -0.5
    %s274 = smul.u32 0, 256
    %v275 = vlaneseq
    %v276 = vand.u32 %v275, 127
    %v277 = vadd.s32 %v276, 128
    %v278 = vstv %s274
    %v279 = vadd.s32 %v278, %v276
    %v280 = vadd.s32 %v278, %v277
    %vm281 = vcmp.lt.s32.totalorder %v279, 256
    %vm282 = vcmp.lt.s32.totalorder %v280, 256
    %v283 = vsel %vm281, %v272, -1e+30
    %v284 = vsel %vm282, %v273, -1e+30
    %s285 = sshra.s32 %s274, 7
    %s286 = sand.u32 %s274, 127
    %s287 = smul.addr %s285, 8
    %s288 = scalar_lea.vmem [#allocation2], %s287
    %289 = vst [vmem:[%s288] sm:$0xff] %v283
    %290 = vst [vmem:[%s288 + $0x8] sm:$0xff] %v284
    %p291 = scmp.eq.s32.totalorder 0, 0
    // Predicated region
    $region26: #{gaussian_generator_forward.1} parent=1 // pred_check
      %p292 = pneg %p291
    $region27: #{gaussian_generator_forward.1} parent=1 // pred_check_branch
      %294 = sbr.rel (%p292) target = $region29
    $region28: #{gaussian_generator_forward.1} parent=1 // pred_region
      %v295 = vld [vmem:[#allocation2] sm:$0xff]
      %v296 = vld [vmem:[#allocation2 + $0x8] sm:$0xff]
      %v297 = vmax.f32 %v295, %v296
      %298 = vmax.xlane.f32.xlu0 %v297
      %v299 = vpop.xlane.xlu0 %298
      %v300 = vsub.f32 %v295, %v299
      %v301 = vsub.f32 %v296, %v299
      %v302 = vmul.f32 %v300, 1.442695
      %v303 = vpow.pop %v302
      %v304 = vmul.f32 %v301, 1.442695
      %v305 = vpow.pop %v304
      %v306 = vadd.f32 %v303, %v305
      %307 = vadd.xlane.f32.xlu0 %v306
      %v308 = vpop.xlane.xlu0 %307
      %v309 = vrcp.pop %v308
      %v310 = vmul.f32 1.0, %v309
      %v311 = vmul.f32 %v303, %v310
      %v312 = vmul.f32 %v305, %v310
      %v313 = vld [vmem:[%s4] sm:$0xff]
      %vm314 = vcmask 64512
      %v316 = vsel %vm314, %v313, 0
      %318 = vmatprep.subr.mxu0 0.0
      %319 = vmatpush1.msra.mxu0 0.0
      %320 = vmatprep.subr.mxu0 0.0
      %321 = vmatpush1.msra.mxu0 0.0
      %322 = vmatprep.subr.mxu0 0.0
      %323 = vmatpush1.msra.mxu0 0.0
      %324 = vmatprep.subr.mxu0 0.0
      %325 = vmatpush1.msra.mxu0 0.0
      %326 = vmatprep.subr.mxu0 0.0
      %327 = vmatpush1.msra.mxu0 0.0
      %328 = vmatprep.subr.mxu0 0.0
      %329 = vmatpush1.msra.mxu0 0.0
      %330 = vmatprep.subr.mxu0 0.0
      %331 = vmatpush1.msra.mxu0 0.0
      %332 = vmatprep.subr.mxu0 0.0
      %333 = vmatpush1.msra.mxu0 0.0
      %334 = vmatprep.subr.mxu0 0.0
      %335 = vmatpush1.msra.mxu0 0.0
      %336 = vmatprep.subr.mxu0 0.0
      %337 = vmatpush1.msra.mxu0 0.0
      %338 = vmatprep.subr.mxu0 0.0
      %339 = vmatpush1.msra.mxu0 0.0
      %340 = vmatprep.subr.mxu0 0.0
      %341 = vmatpush1.msra.mxu0 0.0
      %342 = vmatprep.subr.mxu0 0.0
      %343 = vmatpush1.msra.mxu0 0.0
      %344 = vmatprep.subr.mxu0 0.0
      %345 = vmatpush1.msra.mxu0 0.0
      %346 = vmatprep.subr.mxu0 0.0
      %347 = vmatpush1.msra.mxu0 0.0
      %348 = vmatprep.subr.mxu0 %v312
      %349 = vmatpush1.msra.mxu0 %v311
      %350 = vmatprep.subr.mxu0 0.0
      %351 = vmatpush2.msra.mxu0 0.0
      %352 = vmatprep.subr.mxu0 0.0
      %353 = vmatpush2.msra.mxu0 0.0
      %354 = vmatprep.subr.mxu0 0.0
      %355 = vmatpush2.msra.mxu0 0.0
      %356 = vmatprep.subr.mxu0 0.0
      %357 = vmatpush2.msra.mxu0 0.0
      %358 = vmatprep.subr.mxu0 0.0
      %359 = vmatpush2.msra.mxu0 0.0
      %360 = vmatprep.subr.mxu0 0.0
      %361 = vmatpush2.msra.mxu0 0.0
      %362 = vmatprep.subr.mxu0 0.0
      %363 = vmatpush2.msra.mxu0 0.0
      %364 = vmatprep.subr.mxu0 0.0
      %365 = vmatpush2.msra.mxu0 0.0
      %366 = vmatprep.subr.mxu0 0.0
      %367 = vmatpush2.msra.mxu0 0.0
      %368 = vmatprep.subr.mxu0 0.0
      %369 = vmatpush2.msra.mxu0 0.0
      %370 = vmatprep.subr.mxu0 0.0
      %371 = vmatpush2.msra.mxu0 0.0
      %372 = vmatprep.subr.mxu0 0.0
      %373 = vmatpush2.msra.mxu0 0.0
      %374 = vmatprep.subr.mxu0 0.0
      %375 = vmatpush2.msra.mxu0 0.0
      %376 = vmatprep.subr.mxu0 0.0
      %377 = vmatpush2.msra.mxu0 0.0
      %378 = vmatprep.subr.mxu0 0.0
      %379 = vmatpush2.msra.mxu0 0.0
      %380 = vmatprep.subr.mxu0 0.0
      %381 = vmatpush2.msra.mxu0 0.0
      %382 = vmatprep.mubr.f32.mxu0 0.0
      %383 = vmatmul.mubr.f32.gmra.mxu0 %v316
      %v384 = vpop.f32.mrf.mxu0
      %v385 = vadd.f32 0.0, %v384
      %v386 = vpop.f32.mrf.mxu0
      %v387 = vadd.f32 0.0, %v386
      %388 = vdwg.mxu0
      %389 = vst [vmem:[#allocation6] sm:$0xff] %v385
      %390 = vst [vmem:[#allocation6 + $0x8] sm:$0xff] %v387
    $region29: #{gaussian_generator_forward.1} parent=1 // pred_fallthru
      _
    // Predicated region
    $region30: #{gaussian_generator_forward.1} parent=1 // pred_check
      _
    $region31: #{gaussian_generator_forward.1} parent=1 // pred_check_branch
      %392 = sbr.rel (0) target = $region33
    $region32: #{gaussian_generator_forward.1} parent=1 // pred_region
      %s394 = ssub.s32 256, 256
      %395 = vsyncadd [#allocation5], %s394
      %s397 = sshll.u32 [#allocation6], 4
      %s398 = int_to_ptr.vmem [resolvable:$true] %s397
      %400 = dma.vmem_to_hbm [thread:$0]  %s398, 256, %s5, [#allocation5]
    $region33: #{gaussian_generator_forward.1} parent=1 // pred_fallthru
      _
    // Predicated region
    $region34: #{gaussian_generator_forward.1} parent=1 // pred_check
      _
    $region35: #{gaussian_generator_forward.1} parent=1 // pred_check_branch
      %402 = sbr.rel (0) target = $region37
    $region36: #{gaussian_generator_forward.1} parent=1 // pred_region
      %403 = dma.done [#allocation5], 256
    $region37: #{gaussian_generator_forward.1} parent=1 // pred_fallthru
      _
    %404 = vsyncpa [#allocation4], 1
    %405 = vsyncpa [#allocation5], 1

</llo_original>
